<compile_context>
chip_gen: v6e
topology: v6e:2x2x1
jax: 0.10.0
libtpu: 0.0.40
codegen_flags: <defaults>
</compile_context>

<pallas_src>
import jax
import jax.numpy as jnp
from jax.experimental import pallas as pl
from jax.experimental.pallas import tpu as pltpu


def _dot_energy_kernel(x_ref, w1t_ref, b1_ref, w2_ref, b2_ref, o_ref):
    """One grid step processes TB batch elements, batch on lanes.

    x_ref  : (J, I, TB)  transposed batch block
    w1t_ref: (H, I*I)    first Linear weight (torch (out, in) layout, resident)
    b1_ref : (H, 1)
    w2_ref : (H, 1)      second Linear weight as a column
    b2_ref : (1, 1)
    o_ref  : (1, TB)     lane-dense output row for this grid step
    """
    xb = x_ref[...]                                   # (J, I, TB) f32
    jdim, idim, tb = xb.shape

    # Batched gram with batch on lanes:
    #   feat[i*I + k, b] = sum_j x[j, i, b] * x[j, k, b]
    # sublane-broadcast of one column, full-vreg VPU multiplies, reduction over
    # the untiled leading J axis (plain vreg adds) -> no MXU/XLU micro-matmuls.
    blocks = []
    for i in range(idim):
        xi = xb[:, i:i + 1, :]                        # (J, 1, TB)
        blocks.append(jnp.sum(xi * xb, axis=0))       # (I, TB)
    feat = jnp.concatenate(blocks, axis=0)            # (I*I, TB), torch flatten order

    # Linear(I*I -> H) on the MXU: M=H, K=I*I, N=TB (batch on result lanes).
    h = jnp.dot(w1t_ref[...], feat,
                preferred_element_type=jnp.float32) + b1_ref[...]   # (H, TB)
    h = jax.nn.sigmoid(h)

    # Linear(H -> 1): per-lane multiply + sublane reduction over H.
    e = jnp.sum(h * w2_ref[...], axis=0, keepdims=True)             # (1, TB)
    o_ref[...] = (e + b2_ref[...]).astype(o_ref.dtype)


def _round_up(a, m):
    return ((a + m - 1) // m) * m


def dot_product_energy(x, w1, b1, w2, b2, *, block_n=2048):
    """x: (N, I, J) f32; w1: (I*I, H); b1: (H,); w2: (H, 1); b2: (1,)."""
    N, I, J = x.shape
    in_f, H = w1.shape
    assert in_f == I * I
    assert w2.shape == (H, 1)

    # Lane-dense batch block; pad N up to a multiple of TB (padded lanes carry
    # zeros through the network and are sliced off at the end).
    TB = min(_round_up(block_n, 128), _round_up(N, 128))
    Np = _round_up(N, TB)
    num_blocks = Np // TB

    # Feature-major, batch-on-lanes layout (layout plumbing in the wrapper).
    x_t = jnp.transpose(x, (2, 1, 0))                 # (J, I, N)
    if Np != N:
        x_t = jnp.pad(x_t, ((0, 0), (0, 0), (0, Np - N)))

    w1t = w1.T                                        # (H, I*I) torch layout
    b1_col = b1.reshape(H, 1)
    w2_col = w2.reshape(H, 1)
    b2_2d = b2.reshape(1, 1)

    out = pl.pallas_call(
        _dot_energy_kernel,
        out_shape=jax.ShapeDtypeStruct((1, Np), jnp.float32),
        grid=(num_blocks,),
        in_specs=[
            pl.BlockSpec((J, I, TB), lambda n: (0, 0, n)),   # x batch block
            pl.BlockSpec((H, in_f), lambda n: (0, 0)),       # w1^T (resident)
            pl.BlockSpec((H, 1), lambda n: (0, 0)),          # b1
            pl.BlockSpec((H, 1), lambda n: (0, 0)),          # w2 column
            pl.BlockSpec((1, 1), lambda n: (0, 0)),          # b2
        ],
        out_specs=pl.BlockSpec((1, TB), lambda n: (0, n)),
        compiler_params=pltpu.CompilerParams(
            dimension_semantics=("parallel",)),
    )(x_t, w1t, b1_col, w2_col, b2_2d)

    # (1, Np) -> (Np, 1) in batch order, drop padding.
    return out.reshape(Np, 1)[:N]


if __name__ == "__main__":
    # Small shapes implied by the forward: x (N, I, J); in_features = I*I.
    N, I, J = 2, 8, 16
    in_features = I * I          # 64
    hidden_features = 32

    key = jax.random.PRNGKey(0)
    kx, k1, k2, k3, k4 = jax.random.split(key, 5)

    x = jax.random.normal(kx, (N, I, J), dtype=jnp.float32)

    # Deterministic torch-Linear-style init: U(-1/sqrt(fan_in), 1/sqrt(fan_in))
    lim1 = 1.0 / jnp.sqrt(jnp.float32(in_features))
    w1 = jax.random.uniform(k1, (in_features, hidden_features),
                            minval=-lim1, maxval=lim1, dtype=jnp.float32)
    b1 = jax.random.uniform(k2, (hidden_features,),
                            minval=-lim1, maxval=lim1, dtype=jnp.float32)
    lim2 = 1.0 / jnp.sqrt(jnp.float32(hidden_features))
    w2 = jax.random.uniform(k3, (hidden_features, 1),
                            minval=-lim2, maxval=lim2, dtype=jnp.float32)
    b2 = jax.random.uniform(k4, (1,),
                            minval=-lim2, maxval=lim2, dtype=jnp.float32)

    out = dot_product_energy(x, w1, b1, w2, b2)
    out = jax.block_until_ready(out)

    # Pure-JAX reference for a correctness sanity check.
    feat = jnp.einsum('nij,nkj->nik', x, x).reshape(N, -1)
    ref = jax.nn.sigmoid(feat @ w1 + b1[None, :]) @ w2 + b2[None, :]

    assert out.shape == (N, 1)
    assert jnp.allclose(out, ref, rtol=1e-5, atol=1e-5), (out, ref)
    print("KERNEL_OK")
</pallas_src>

<mosaic_0001>
module attributes {stable_mosaic.version = 11 : i64} {
  func.func @_dot_energy_kernel(%arg0: i32, %arg1: memref<16x8x128xf32, #tpu.memory_space<vmem>>, %arg2: memref<32x64xf32, #tpu.memory_space<vmem>>, %arg3: memref<32x1xf32, #tpu.memory_space<vmem>>, %arg4: memref<32x1xf32, #tpu.memory_space<vmem>>, %arg5: memref<1x1xf32, #tpu.memory_space<vmem>>, %arg6: memref<1x128xf32, #tpu.memory_space<vmem>>) attributes {dimension_semantics = [#tpu.dimension_semantics<parallel>], iteration_bounds = array<i64: 1>, scalar_prefetch = 0 : i64, scratch_operands = 0 : i64, tpu.core_type = #tpu.core_type<tc>, window_params = [{transform_indices = @transform_0, window_bounds = array<i64: 16, 8, 128>}, {pipeline_mode = #tpu.pipeline_mode<synchronous>, transform_indices = @transform_1, window_bounds = array<i64: 32, 64>}, {pipeline_mode = #tpu.pipeline_mode<synchronous>, transform_indices = @transform_2, window_bounds = array<i64: 32, 1>}, {pipeline_mode = #tpu.pipeline_mode<synchronous>, transform_indices = @transform_3, window_bounds = array<i64: 32, 1>}, {pipeline_mode = #tpu.pipeline_mode<synchronous>, transform_indices = @transform_4, window_bounds = array<i64: 1, 1>}, {transform_indices = @transform_5, window_bounds = array<i64: 1, 128>}]} {
    %c0 = arith.constant 0 : index
    %c0_0 = arith.constant 0 : index
    %c0_1 = arith.constant 0 : index
    %0 = vector.load %arg1[%c0, %c0_0, %c0_1] : memref<16x8x128xf32, #tpu.memory_space<vmem>>, vector<16x8x128xf32>
    %1 = vector.extract_strided_slice %0 {offsets = [0, 0, 0], sizes = [16, 1, 128], strides = [1, 1, 1]} : vector<16x8x128xf32> to vector<16x1x128xf32>
    %2 = vector.broadcast %1 : vector<16x1x128xf32> to vector<16x8x128xf32>
    %3 = arith.mulf %2, %0 : vector<16x8x128xf32>
    %cst = arith.constant dense<0.000000e+00> : vector<8x128xf32>
    %4 = vector.multi_reduction <add>, %3, %cst [0] : vector<16x8x128xf32> to vector<8x128xf32>
    %5 = vector.extract_strided_slice %0 {offsets = [0, 1, 0], sizes = [16, 1, 128], strides = [1, 1, 1]} : vector<16x8x128xf32> to vector<16x1x128xf32>
    %6 = vector.broadcast %5 : vector<16x1x128xf32> to vector<16x8x128xf32>
    %7 = arith.mulf %6, %0 : vector<16x8x128xf32>
    %cst_2 = arith.constant dense<0.000000e+00> : vector<8x128xf32>
    %8 = vector.multi_reduction <add>, %7, %cst_2 [0] : vector<16x8x128xf32> to vector<8x128xf32>
    %9 = vector.extract_strided_slice %0 {offsets = [0, 2, 0], sizes = [16, 1, 128], strides = [1, 1, 1]} : vector<16x8x128xf32> to vector<16x1x128xf32>
    %10 = vector.broadcast %9 : vector<16x1x128xf32> to vector<16x8x128xf32>
    %11 = arith.mulf %10, %0 : vector<16x8x128xf32>
    %cst_3 = arith.constant dense<0.000000e+00> : vector<8x128xf32>
    %12 = vector.multi_reduction <add>, %11, %cst_3 [0] : vector<16x8x128xf32> to vector<8x128xf32>
    %13 = vector.extract_strided_slice %0 {offsets = [0, 3, 0], sizes = [16, 1, 128], strides = [1, 1, 1]} : vector<16x8x128xf32> to vector<16x1x128xf32>
    %14 = vector.broadcast %13 : vector<16x1x128xf32> to vector<16x8x128xf32>
    %15 = arith.mulf %14, %0 : vector<16x8x128xf32>
    %cst_4 = arith.constant dense<0.000000e+00> : vector<8x128xf32>
    %16 = vector.multi_reduction <add>, %15, %cst_4 [0] : vector<16x8x128xf32> to vector<8x128xf32>
    %17 = vector.extract_strided_slice %0 {offsets = [0, 4, 0], sizes = [16, 1, 128], strides = [1, 1, 1]} : vector<16x8x128xf32> to vector<16x1x128xf32>
    %18 = vector.broadcast %17 : vector<16x1x128xf32> to vector<16x8x128xf32>
    %19 = arith.mulf %18, %0 : vector<16x8x128xf32>
    %cst_5 = arith.constant dense<0.000000e+00> : vector<8x128xf32>
    %20 = vector.multi_reduction <add>, %19, %cst_5 [0] : vector<16x8x128xf32> to vector<8x128xf32>
    %21 = vector.extract_strided_slice %0 {offsets = [0, 5, 0], sizes = [16, 1, 128], strides = [1, 1, 1]} : vector<16x8x128xf32> to vector<16x1x128xf32>
    %22 = vector.broadcast %21 : vector<16x1x128xf32> to vector<16x8x128xf32>
    %23 = arith.mulf %22, %0 : vector<16x8x128xf32>
    %cst_6 = arith.constant dense<0.000000e+00> : vector<8x128xf32>
    %24 = vector.multi_reduction <add>, %23, %cst_6 [0] : vector<16x8x128xf32> to vector<8x128xf32>
    %25 = vector.extract_strided_slice %0 {offsets = [0, 6, 0], sizes = [16, 1, 128], strides = [1, 1, 1]} : vector<16x8x128xf32> to vector<16x1x128xf32>
    %26 = vector.broadcast %25 : vector<16x1x128xf32> to vector<16x8x128xf32>
    %27 = arith.mulf %26, %0 : vector<16x8x128xf32>
    %cst_7 = arith.constant dense<0.000000e+00> : vector<8x128xf32>
    %28 = vector.multi_reduction <add>, %27, %cst_7 [0] : vector<16x8x128xf32> to vector<8x128xf32>
    %29 = vector.extract_strided_slice %0 {offsets = [0, 7, 0], sizes = [16, 1, 128], strides = [1, 1, 1]} : vector<16x8x128xf32> to vector<16x1x128xf32>
    %30 = vector.broadcast %29 : vector<16x1x128xf32> to vector<16x8x128xf32>
    %31 = arith.mulf %30, %0 : vector<16x8x128xf32>
    %cst_8 = arith.constant dense<0.000000e+00> : vector<8x128xf32>
    %32 = vector.multi_reduction <add>, %31, %cst_8 [0] : vector<16x8x128xf32> to vector<8x128xf32>
    %33 = tpu.concatenate %4, %8, %12, %16, %20, %24, %28, %32 in 0 : vector<8x128xf32>, vector<8x128xf32>, vector<8x128xf32>, vector<8x128xf32>, vector<8x128xf32>, vector<8x128xf32>, vector<8x128xf32>, vector<8x128xf32> -> vector<64x128xf32>
    %c0_9 = arith.constant 0 : index
    %c0_10 = arith.constant 0 : index
    %34 = vector.load %arg2[%c0_9, %c0_10] : memref<32x64xf32, #tpu.memory_space<vmem>>, vector<32x64xf32>
    %cst_11 = arith.constant dense<0.000000e+00> : vector<32x128xf32>
    %35 = tpu.matmul %34, %33, %cst_11 {dimension_numbers = #tpu.dot_dimension_numbers<[1], [0], [0], [1], [0, 0, 1, 1], [], []>} : vector<32x64xf32>, vector<64x128xf32>, vector<32x128xf32> -> vector<32x128xf32>
    %c0_12 = arith.constant 0 : index
    %c0_13 = arith.constant 0 : index
    %36 = vector.load %arg3[%c0_12, %c0_13] : memref<32x1xf32, #tpu.memory_space<vmem>>, vector<32x1xf32>
    %37 = vector.broadcast %36 : vector<32x1xf32> to vector<32x128xf32>
    %38 = arith.addf %35, %37 : vector<32x128xf32>
    %39 = arith.negf %38 : vector<32x128xf32>
    %40 = math.exp %39 : vector<32x128xf32>
    %cst_14 = arith.constant 1.000000e+00 : f32
    %41 = vector.broadcast %cst_14 : f32 to vector<32x128xf32>
    %42 = arith.addf %41, %40 : vector<32x128xf32>
    %43 = arith.divf %41, %42 : vector<32x128xf32>
    %c0_15 = arith.constant 0 : index
    %c0_16 = arith.constant 0 : index
    %44 = vector.load %arg4[%c0_15, %c0_16] : memref<32x1xf32, #tpu.memory_space<vmem>>, vector<32x1xf32>
    %45 = vector.broadcast %44 : vector<32x1xf32> to vector<32x128xf32>
    %46 = arith.mulf %43, %45 : vector<32x128xf32>
    %cst_17 = arith.constant dense<0.000000e+00> : vector<128xf32>
    %47 = vector.multi_reduction <add>, %46, %cst_17 [0] : vector<32x128xf32> to vector<128xf32>
    %48 = vector.shape_cast %47 : vector<128xf32> to vector<1x128xf32>
    %c0_18 = arith.constant 0 : index
    %c0_19 = arith.constant 0 : index
    %49 = vector.load %arg5[%c0_18, %c0_19] : memref<1x1xf32, #tpu.memory_space<vmem>>, vector<1x1xf32>
    %50 = vector.broadcast %49 : vector<1x1xf32> to vector<1x128xf32>
    %51 = arith.addf %48, %50 : vector<1x128xf32>
    %c0_20 = arith.constant 0 : index
    %c0_21 = arith.constant 0 : index
    %52 = vector.load %arg6[%c0_20, %c0_21] : memref<1x128xf32, #tpu.memory_space<vmem>>, vector<1x128xf32>
    tpu.vector_store %arg6[%c0_20, %c0_21], %51 {strides = array<i32>} : memref<1x128xf32, #tpu.memory_space<vmem>>, vector<1x128xf32>,
    return
  }
  func.func @transform_0(%arg0: i32) -> (i32, i32, i32) {
    %c0_i32 = arith.constant 0 : i32
    %c0_i32_0 = arith.constant 0 : i32
    %c0_i32_1 = arith.constant 0 : i32
    return %c0_i32, %c0_i32_0, %arg0 : i32, i32, i32
  }
  func.func @transform_1(%arg0: i32) -> (i32, i32) {
    %c0_i32 = arith.constant 0 : i32
    %c0_i32_0 = arith.constant 0 : i32
    %c0_i32_1 = arith.constant 0 : i32
    return %c0_i32, %c0_i32_0 : i32, i32
  }
  func.func @transform_2(%arg0: i32) -> (i32, i32) {
    %c0_i32 = arith.constant 0 : i32
    %c0_i32_0 = arith.constant 0 : i32
    %c0_i32_1 = arith.constant 0 : i32
    return %c0_i32, %c0_i32_0 : i32, i32
  }
  func.func @transform_3(%arg0: i32) -> (i32, i32) {
    %c0_i32 = arith.constant 0 : i32
    %c0_i32_0 = arith.constant 0 : i32
    %c0_i32_1 = arith.constant 0 : i32
    return %c0_i32, %c0_i32_0 : i32, i32
  }
  func.func @transform_4(%arg0: i32) -> (i32, i32) {
    %c0_i32 = arith.constant 0 : i32
    %c0_i32_0 = arith.constant 0 : i32
    %c0_i32_1 = arith.constant 0 : i32
    return %c0_i32, %c0_i32_0 : i32, i32
  }
  func.func @transform_5(%arg0: i32) -> (i32, i32) {
    %c0_i32 = arith.constant 0 : i32
    %c0_i32_0 = arith.constant 0 : i32
    return %c0_i32, %arg0 : i32, i32
  }
}

</mosaic_0001>

<llo_original>
// kernel: tpu_custom_call.1
$region0: #{tpu_custom_call.1}
  #allocation0 [shape = 'u32[]', space=smem, size = 0x4, offset = 0x4, fixed_abs, tag = 'smem constant byte address 0x4 - core index']
  #allocation1 [shape = 'u32[144,128]{1,0:T(1,128)}', space=vmem, size = 0x12000, scoped, tag = 'internal scratch']
  #allocation2 [shape = 'f32[1,1]{1,0:T(1,128)S(1)}', space=vmem, size = 0x200, scoped, tag = 'scoped memory for tpu_custom_call.1']
  %s0 = inlined_call_operand.hbm [shape: f32[16,8,128], index: 0, kind: input, shape index: {}]
  %s1 = inlined_call_operand.vmem [shape: f32[32,64], index: 1, kind: input, shape index: {}]
  %s2 = inlined_call_operand.vmem [shape: f32[32,1], index: 2, kind: input, shape index: {}]
  %s3 = inlined_call_operand.vmem [shape: f32[32,1], index: 3, kind: input, shape index: {}]
  %s4 = inlined_call_operand.<no memory space> [shape: f32[1,1], index: 4, kind: input, shape index: {}]
  %s5 = inlined_call_operand.hbm [shape: f32[1,128], index: 5, kind: output, shape index: {}]
  %s6 = sld [smem:[#allocation0]]
  $region34: #{tpu_custom_call.1} parent=0
    _
  %s8 = ssub.s32 1, %s6
  %s9 = scalar_select 0, %s8, %s6
  %v10 = vstv %s4
  %11 = vst [vmem:[#allocation2] sm:$0x1] %v10
  $region1: #{tpu_custom_call.1} parent=0
    #allocation3 [shape = 'u8[65536]{0}', space=vmem, size = 0x10000, scoped, tag = 'input window, operand 0, single buffered']
    #allocation4 [shape = 's32[1]{0}', space=sflag, size = 0x4, scoped, tag = 'scoped memory for tpu_custom_call.1']
    #allocation5 [shape = 's32[1]{0}', space=sflag, size = 0x4, scoped, tag = 'scoped memory for tpu_custom_call.1']
    #allocation6 [shape = 'u8[512]{0}', space=vmem, size = 0x400, scoped, tag = 'output window, operand 0, single buffered']
    %12 = vsyncpa [#allocation4], 0
    %13 = vsyncpa [#allocation5], 0
    // Predicated region
    $region2: #{tpu_custom_call.1} parent=1 // pred_check
      _
    $region3: #{tpu_custom_call.1} parent=1 // pred_check_branch
      %15 = sbr.rel (0) target = $region5
    $region4: #{tpu_custom_call.1} parent=1 // pred_region
      %s17 = ssub.s32 2048, 2048
      %18 = vsyncadd [#allocation4], %s17
      %s19 = sshll.u32 [#allocation3], 4
      %s20 = int_to_ptr.vmem [resolvable:$true] %s19
      %25 = dma.hbm_to_vmem [thread:$0]  %s0, 2048, %s20, [#allocation4], 128, 128, 8
    $region5: #{tpu_custom_call.1} parent=1 // pred_fallthru
      _
    // Predicated region
    $region6: #{tpu_custom_call.1} parent=1 // pred_check
      _
    $region7: #{tpu_custom_call.1} parent=1 // pred_check_branch
      %27 = sbr.rel (0) target = $region9
    $region8: #{tpu_custom_call.1} parent=1 // pred_region
      _
    $region9: #{tpu_custom_call.1} parent=1 // pred_fallthru
      _
    // Predicated region
    $region10: #{tpu_custom_call.1} parent=1 // pred_check
      _
    $region11: #{tpu_custom_call.1} parent=1 // pred_check_branch
      %29 = sbr.rel (0) target = $region13
    $region12: #{tpu_custom_call.1} parent=1 // pred_region
      _
    $region13: #{tpu_custom_call.1} parent=1 // pred_fallthru
      _
    // Predicated region
    $region14: #{tpu_custom_call.1} parent=1 // pred_check
      _
    $region15: #{tpu_custom_call.1} parent=1 // pred_check_branch
      %31 = sbr.rel (0) target = $region17
    $region16: #{tpu_custom_call.1} parent=1 // pred_region
      _
    $region17: #{tpu_custom_call.1} parent=1 // pred_fallthru
      _
    // Predicated region
    $region18: #{tpu_custom_call.1} parent=1 // pred_check
      _
    $region19: #{tpu_custom_call.1} parent=1 // pred_check_branch
      %33 = sbr.rel (0) target = $region21
    $region20: #{tpu_custom_call.1} parent=1 // pred_region
      _
    $region21: #{tpu_custom_call.1} parent=1 // pred_fallthru
      _
    // Predicated region
    $region22: #{tpu_custom_call.1} parent=1 // pred_check
      _
    $region23: #{tpu_custom_call.1} parent=1 // pred_check_branch
      %35 = sbr.rel (0) target = $region25
    $region24: #{tpu_custom_call.1} parent=1 // pred_region
      %36 = dma.done [#allocation4], 2048
    $region25: #{tpu_custom_call.1} parent=1 // pred_fallthru
      _
    %v37 = vld [vmem:[#allocation3] sm:$0xff]
    %v38 = vld [vmem:[#allocation3 + $0x8] sm:$0xff]
    %v39 = vld [vmem:[#allocation3 + $0x10] sm:$0xff]
    %v40 = vld [vmem:[#allocation3 + $0x18] sm:$0xff]
    %v41 = vld [vmem:[#allocation3 + $0x20] sm:$0xff]
    %v42 = vld [vmem:[#allocation3 + $0x28] sm:$0xff]
    %v43 = vld [vmem:[#allocation3 + $0x30] sm:$0xff]
    %v44 = vld [vmem:[#allocation3 + $0x38] sm:$0xff]
    %v45 = vld [vmem:[#allocation3 + $0x40] sm:$0xff]
    %v46 = vld [vmem:[#allocation3 + $0x48] sm:$0xff]
    %v47 = vld [vmem:[#allocation3 + $0x50] sm:$0xff]
    %v48 = vld [vmem:[#allocation3 + $0x58] sm:$0xff]
    %v49 = vld [vmem:[#allocation3 + $0x60] sm:$0xff]
    %v50 = vld [vmem:[#allocation3 + $0x68] sm:$0xff]
    %v51 = vld [vmem:[#allocation3 + $0x70] sm:$0xff]
    %v52 = vld [vmem:[#allocation3 + $0x78] sm:$0xff]
    %v53 = vlaneseq
    %v54 = vshrl.u32 %v53, 7
    %v55 = vsub.s32 0, %v54
    %v56 = vrot.slane %v37, %v55
    %v57 = vlaneseq
    %v58 = vshrl.u32 %v57, 7
    %v59 = vsub.s32 0, %v58
    %v60 = vrot.slane %v38, %v59
    %v61 = vlaneseq
    %v62 = vshrl.u32 %v61, 7
    %v63 = vsub.s32 0, %v62
    %v64 = vrot.slane %v39, %v63
    %v65 = vlaneseq
    %v66 = vshrl.u32 %v65, 7
    %v67 = vsub.s32 0, %v66
    %v68 = vrot.slane %v40, %v67
    %v69 = vlaneseq
    %v70 = vshrl.u32 %v69, 7
    %v71 = vsub.s32 0, %v70
    %v72 = vrot.slane %v41, %v71
    %v73 = vlaneseq
    %v74 = vshrl.u32 %v73, 7
    %v75 = vsub.s32 0, %v74
    %v76 = vrot.slane %v42, %v75
    %v77 = vlaneseq
    %v78 = vshrl.u32 %v77, 7
    %v79 = vsub.s32 0, %v78
    %v80 = vrot.slane %v43, %v79
    %v81 = vlaneseq
    %v82 = vshrl.u32 %v81, 7
    %v83 = vsub.s32 0, %v82
    %v84 = vrot.slane %v44, %v83
    %v85 = vlaneseq
    %v86 = vshrl.u32 %v85, 7
    %v87 = vsub.s32 0, %v86
    %v88 = vrot.slane %v45, %v87
    %v89 = vlaneseq
    %v90 = vshrl.u32 %v89, 7
    %v91 = vsub.s32 0, %v90
    %v92 = vrot.slane %v46, %v91
    %v93 = vlaneseq
    %v94 = vshrl.u32 %v93, 7
    %v95 = vsub.s32 0, %v94
    %v96 = vrot.slane %v47, %v95
    %v97 = vlaneseq
    %v98 = vshrl.u32 %v97, 7
    %v99 = vsub.s32 0, %v98
    %v100 = vrot.slane %v48, %v99
    %v101 = vlaneseq
    %v102 = vshrl.u32 %v101, 7
    %v103 = vsub.s32 0, %v102
    %v104 = vrot.slane %v49, %v103
    %v105 = vlaneseq
    %v106 = vshrl.u32 %v105, 7
    %v107 = vsub.s32 0, %v106
    %v108 = vrot.slane %v50, %v107
    %v109 = vlaneseq
    %v110 = vshrl.u32 %v109, 7
    %v111 = vsub.s32 0, %v110
    %v112 = vrot.slane %v51, %v111
    %v113 = vlaneseq
    %v114 = vshrl.u32 %v113, 7
    %v115 = vsub.s32 0, %v114
    %v116 = vrot.slane %v52, %v115
    %v117 = vmul.f32 %v56, %v37
    %v118 = vmul.f32 %v60, %v38
    %v119 = vmul.f32 %v64, %v39
    %v120 = vmul.f32 %v68, %v40
    %v121 = vmul.f32 %v72, %v41
    %v122 = vmul.f32 %v76, %v42
    %v123 = vmul.f32 %v80, %v43
    %v124 = vmul.f32 %v84, %v44
    %v125 = vmul.f32 %v88, %v45
    %v126 = vmul.f32 %v92, %v46
    %v127 = vmul.f32 %v96, %v47
    %v128 = vmul.f32 %v100, %v48
    %v129 = vmul.f32 %v104, %v49
    %v130 = vmul.f32 %v108, %v50
    %v131 = vmul.f32 %v112, %v51
    %v132 = vmul.f32 %v116, %v52
    %v133 = vadd.f32 %v117, %v118
    %v134 = vadd.f32 %v133, %v119
    %v135 = vadd.f32 %v134, %v120
    %v136 = vadd.f32 %v135, %v121
    %v137 = vadd.f32 %v136, %v122
    %v138 = vadd.f32 %v137, %v123
    %v139 = vadd.f32 %v138, %v124
    %v140 = vadd.f32 %v139, %v125
    %v141 = vadd.f32 %v140, %v126
    %v142 = vadd.f32 %v141, %v127
    %v143 = vadd.f32 %v142, %v128
    %v144 = vadd.f32 %v143, %v129
    %v145 = vadd.f32 %v144, %v130
    %v146 = vadd.f32 %v145, %v131
    %v147 = vadd.f32 %v146, %v132
    %v148 = vlaneseq
    %v149 = vshrl.u32 %v148, 7
    %v150 = vsub.s32 1, %v149
    %v151 = vrot.slane %v37, %v150
    %v152 = vlaneseq
    %v153 = vshrl.u32 %v152, 7
    %v154 = vsub.s32 1, %v153
    %v155 = vrot.slane %v38, %v154
    %v156 = vlaneseq
    %v157 = vshrl.u32 %v156, 7
    %v158 = vsub.s32 1, %v157
    %v159 = vrot.slane %v39, %v158
    %v160 = vlaneseq
    %v161 = vshrl.u32 %v160, 7
    %v162 = vsub.s32 1, %v161
    %v163 = vrot.slane %v40, %v162
    %v164 = vlaneseq
    %v165 = vshrl.u32 %v164, 7
    %v166 = vsub.s32 1, %v165
    %v167 = vrot.slane %v41, %v166
    %v168 = vlaneseq
    %v169 = vshrl.u32 %v168, 7
    %v170 = vsub.s32 1, %v169
    %v171 = vrot.slane %v42, %v170
    %v172 = vlaneseq
    %v173 = vshrl.u32 %v172, 7
    %v174 = vsub.s32 1, %v173
    %v175 = vrot.slane %v43, %v174
    %v176 = vlaneseq
    %v177 = vshrl.u32 %v176, 7
    %v178 = vsub.s32 1, %v177
    %v179 = vrot.slane %v44, %v178
    %v180 = vlaneseq
    %v181 = vshrl.u32 %v180, 7
    %v182 = vsub.s32 1, %v181
    %v183 = vrot.slane %v45, %v182
    %v184 = vlaneseq
    %v185 = vshrl.u32 %v184, 7
    %v186 = vsub.s32 1, %v185
    %v187 = vrot.slane %v46, %v186
    %v188 = vlaneseq
    %v189 = vshrl.u32 %v188, 7
    %v190 = vsub.s32 1, %v189
    %v191 = vrot.slane %v47, %v190
    %v192 = vlaneseq
    %v193 = vshrl.u32 %v192, 7
    %v194 = vsub.s32 1, %v193
    %v195 = vrot.slane %v48, %v194
    %v196 = vlaneseq
    %v197 = vshrl.u32 %v196, 7
    %v198 = vsub.s32 1, %v197
    %v199 = vrot.slane %v49, %v198
    %v200 = vlaneseq
    %v201 = vshrl.u32 %v200, 7
    %v202 = vsub.s32 1, %v201
    %v203 = vrot.slane %v50, %v202
    %v204 = vlaneseq
    %v205 = vshrl.u32 %v204, 7
    %v206 = vsub.s32 1, %v205
    %v207 = vrot.slane %v51, %v206
    %v208 = vlaneseq
    %v209 = vshrl.u32 %v208, 7
    %v210 = vsub.s32 1, %v209
    %v211 = vrot.slane %v52, %v210
    %v212 = vmul.f32 %v151, %v37
    %v213 = vmul.f32 %v155, %v38
    %v214 = vmul.f32 %v159, %v39
    %v215 = vmul.f32 %v163, %v40
    %v216 = vmul.f32 %v167, %v41
    %v217 = vmul.f32 %v171, %v42
    %v218 = vmul.f32 %v175, %v43
    %v219 = vmul.f32 %v179, %v44
    %v220 = vmul.f32 %v183, %v45
    %v221 = vmul.f32 %v187, %v46
    %v222 = vmul.f32 %v191, %v47
    %v223 = vmul.f32 %v195, %v48
    %v224 = vmul.f32 %v199, %v49
    %v225 = vmul.f32 %v203, %v50
    %v226 = vmul.f32 %v207, %v51
    %v227 = vmul.f32 %v211, %v52
    %v228 = vadd.f32 %v212, %v213
    %v229 = vadd.f32 %v228, %v214
    %v230 = vadd.f32 %v229, %v215
    %v231 = vadd.f32 %v230, %v216
    %v232 = vadd.f32 %v231, %v217
    %v233 = vadd.f32 %v232, %v218
    %v234 = vadd.f32 %v233, %v219
    %v235 = vadd.f32 %v234, %v220
    %v236 = vadd.f32 %v235, %v221
    %v237 = vadd.f32 %v236, %v222
    %v238 = vadd.f32 %v237, %v223
    %v239 = vadd.f32 %v238, %v224
    %v240 = vadd.f32 %v239, %v225
    %v241 = vadd.f32 %v240, %v226
    %v242 = vadd.f32 %v241, %v227
    %v243 = vlaneseq
    %v244 = vshrl.u32 %v243, 7
    %v245 = vsub.s32 2, %v244
    %v246 = vrot.slane %v37, %v245
    %v247 = vlaneseq
    %v248 = vshrl.u32 %v247, 7
    %v249 = vsub.s32 2, %v248
    %v250 = vrot.slane %v38, %v249
    %v251 = vlaneseq
    %v252 = vshrl.u32 %v251, 7
    %v253 = vsub.s32 2, %v252
    %v254 = vrot.slane %v39, %v253
    %v255 = vlaneseq
    %v256 = vshrl.u32 %v255, 7
    %v257 = vsub.s32 2, %v256
    %v258 = vrot.slane %v40, %v257
    %v259 = vlaneseq
    %v260 = vshrl.u32 %v259, 7
    %v261 = vsub.s32 2, %v260
    %v262 = vrot.slane %v41, %v261
    %v263 = vlaneseq
    %v264 = vshrl.u32 %v263, 7
    %v265 = vsub.s32 2, %v264
    %v266 = vrot.slane %v42, %v265
    %v267 = vlaneseq
    %v268 = vshrl.u32 %v267, 7
    %v269 = vsub.s32 2, %v268
    %v270 = vrot.slane %v43, %v269
    %v271 = vlaneseq
    %v272 = vshrl.u32 %v271, 7
    %v273 = vsub.s32 2, %v272
    %v274 = vrot.slane %v44, %v273
    %v275 = vlaneseq
    %v276 = vshrl.u32 %v275, 7
    %v277 = vsub.s32 2, %v276
    %v278 = vrot.slane %v45, %v277
    %v279 = vlaneseq
    %v280 = vshrl.u32 %v279, 7
    %v281 = vsub.s32 2, %v280
    %v282 = vrot.slane %v46, %v281
    %v283 = vlaneseq
    %v284 = vshrl.u32 %v283, 7
    %v285 = vsub.s32 2, %v284
    %v286 = vrot.slane %v47, %v285
    %v287 = vlaneseq
    %v288 = vshrl.u32 %v287, 7
    %v289 = vsub.s32 2, %v288
    %v290 = vrot.slane %v48, %v289
    %v291 = vlaneseq
    %v292 = vshrl.u32 %v291, 7
    %v293 = vsub.s32 2, %v292
    %v294 = vrot.slane %v49, %v293
    %v295 = vlaneseq
    %v296 = vshrl.u32 %v295, 7
    %v297 = vsub.s32 2, %v296
    %v298 = vrot.slane %v50, %v297
    %v299 = vlaneseq
    %v300 = vshrl.u32 %v299, 7
    %v301 = vsub.s32 2, %v300
    %v302 = vrot.slane %v51, %v301
    %v303 = vlaneseq
    %v304 = vshrl.u32 %v303, 7
    %v305 = vsub.s32 2, %v304
    %v306 = vrot.slane %v52, %v305
    %v307 = vmul.f32 %v246, %v37
    %v308 = vmul.f32 %v250, %v38
    %v309 = vmul.f32 %v254, %v39
    %v310 = vmul.f32 %v258, %v40
    %v311 = vmul.f32 %v262, %v41
    %v312 = vmul.f32 %v266, %v42
    %v313 = vmul.f32 %v270, %v43
    %v314 = vmul.f32 %v274, %v44
    %v315 = vmul.f32 %v278, %v45
    %v316 = vmul.f32 %v282, %v46
    %v317 = vmul.f32 %v286, %v47
    %v318 = vmul.f32 %v290, %v48
    %v319 = vmul.f32 %v294, %v49
    %v320 = vmul.f32 %v298, %v50
    %v321 = vmul.f32 %v302, %v51
    %v322 = vmul.f32 %v306, %v52
    %v323 = vadd.f32 %v307, %v308
    %v324 = vadd.f32 %v323, %v309
    %v325 = vadd.f32 %v324, %v310
    %v326 = vadd.f32 %v325, %v311
    %v327 = vadd.f32 %v326, %v312
    %v328 = vadd.f32 %v327, %v313
    %v329 = vadd.f32 %v328, %v314
    %v330 = vadd.f32 %v329, %v315
    %v331 = vadd.f32 %v330, %v316
    %v332 = vadd.f32 %v331, %v317
    %v333 = vadd.f32 %v332, %v318
    %v334 = vadd.f32 %v333, %v319
    %v335 = vadd.f32 %v334, %v320
    %v336 = vadd.f32 %v335, %v321
    %v337 = vadd.f32 %v336, %v322
    %v338 = vlaneseq
    %v339 = vshrl.u32 %v338, 7
    %v340 = vsub.s32 3, %v339
    %v341 = vrot.slane %v37, %v340
    %v342 = vlaneseq
    %v343 = vshrl.u32 %v342, 7
    %v344 = vsub.s32 3, %v343
    %v345 = vrot.slane %v38, %v344
    %v346 = vlaneseq
    %v347 = vshrl.u32 %v346, 7
    %v348 = vsub.s32 3, %v347
    %v349 = vrot.slane %v39, %v348
    %v350 = vlaneseq
    %v351 = vshrl.u32 %v350, 7
    %v352 = vsub.s32 3, %v351
    %v353 = vrot.slane %v40, %v352
    %v354 = vlaneseq
    %v355 = vshrl.u32 %v354, 7
    %v356 = vsub.s32 3, %v355
    %v357 = vrot.slane %v41, %v356
    %v358 = vlaneseq
    %v359 = vshrl.u32 %v358, 7
    %v360 = vsub.s32 3, %v359
    %v361 = vrot.slane %v42, %v360
    %v362 = vlaneseq
    %v363 = vshrl.u32 %v362, 7
    %v364 = vsub.s32 3, %v363
    %v365 = vrot.slane %v43, %v364
    %v366 = vlaneseq
    %v367 = vshrl.u32 %v366, 7
    %v368 = vsub.s32 3, %v367
    %v369 = vrot.slane %v44, %v368
    %v370 = vlaneseq
    %v371 = vshrl.u32 %v370, 7
    %v372 = vsub.s32 3, %v371
    %v373 = vrot.slane %v45, %v372
    %v374 = vlaneseq
    %v375 = vshrl.u32 %v374, 7
    %v376 = vsub.s32 3, %v375
    %v377 = vrot.slane %v46, %v376
    %v378 = vlaneseq
    %v379 = vshrl.u32 %v378, 7
    %v380 = vsub.s32 3, %v379
    %v381 = vrot.slane %v47, %v380
    %v382 = vlaneseq
    %v383 = vshrl.u32 %v382, 7
    %v384 = vsub.s32 3, %v383
    %v385 = vrot.slane %v48, %v384
    %v386 = vlaneseq
    %v387 = vshrl.u32 %v386, 7
    %v388 = vsub.s32 3, %v387
    %v389 = vrot.slane %v49, %v388
    %v390 = vlaneseq
    %v391 = vshrl.u32 %v390, 7
    %v392 = vsub.s32 3, %v391
    %v393 = vrot.slane %v50, %v392
    %v394 = vlaneseq
    %v395 = vshrl.u32 %v394, 7
    %v396 = vsub.s32 3, %v395
    %v397 = vrot.slane %v51, %v396
    %v398 = vlaneseq
    %v399 = vshrl.u32 %v398, 7
    %v400 = vsub.s32 3, %v399
    %v401 = vrot.slane %v52, %v400
    %v402 = vmul.f32 %v341, %v37
    %v403 = vmul.f32 %v345, %v38
    %v404 = vmul.f32 %v349, %v39
    %v405 = vmul.f32 %v353, %v40
    %v406 = vmul.f32 %v357, %v41
    %v407 = vmul.f32 %v361, %v42
    %v408 = vmul.f32 %v365, %v43
    %v409 = vmul.f32 %v369, %v44
    %v410 = vmul.f32 %v373, %v45
    %v411 = vmul.f32 %v377, %v46
    %v412 = vmul.f32 %v381, %v47
    %v413 = vmul.f32 %v385, %v48
    %v414 = vmul.f32 %v389, %v49
    %v415 = vmul.f32 %v393, %v50
    %v416 = vmul.f32 %v397, %v51
    %v417 = vmul.f32 %v401, %v52
    %v418 = vadd.f32 %v402, %v403
    %v419 = vadd.f32 %v418, %v404
    %v420 = vadd.f32 %v419, %v405
    %v421 = vadd.f32 %v420, %v406
    %v422 = vadd.f32 %v421, %v407
    %v423 = vadd.f32 %v422, %v408
    %v424 = vadd.f32 %v423, %v409
    %v425 = vadd.f32 %v424, %v410
    %v426 = vadd.f32 %v425, %v411
    %v427 = vadd.f32 %v426, %v412
    %v428 = vadd.f32 %v427, %v413
    %v429 = vadd.f32 %v428, %v414
    %v430 = vadd.f32 %v429, %v415
    %v431 = vadd.f32 %v430, %v416
    %v432 = vadd.f32 %v431, %v417
    %v433 = vlaneseq
    %v434 = vshrl.u32 %v433, 7
    %v435 = vsub.s32 4, %v434
    %v436 = vrot.slane %v37, %v435
    %v437 = vlaneseq
    %v438 = vshrl.u32 %v437, 7
    %v439 = vsub.s32 4, %v438
    %v440 = vrot.slane %v38, %v439
    %v441 = vlaneseq
    %v442 = vshrl.u32 %v441, 7
    %v443 = vsub.s32 4, %v442
    %v444 = vrot.slane %v39, %v443
    %v445 = vlaneseq
    %v446 = vshrl.u32 %v445, 7
    %v447 = vsub.s32 4, %v446
    %v448 = vrot.slane %v40, %v447
    %v449 = vlaneseq
    %v450 = vshrl.u32 %v449, 7
    %v451 = vsub.s32 4, %v450
    %v452 = vrot.slane %v41, %v451
    %v453 = vlaneseq
    %v454 = vshrl.u32 %v453, 7
    %v455 = vsub.s32 4, %v454
    %v456 = vrot.slane %v42, %v455
    %v457 = vlaneseq
    %v458 = vshrl.u32 %v457, 7
    %v459 = vsub.s32 4, %v458
    %v460 = vrot.slane %v43, %v459
    %v461 = vlaneseq
    %v462 = vshrl.u32 %v461, 7
    %v463 = vsub.s32 4, %v462
    %v464 = vrot.slane %v44, %v463
    %v465 = vlaneseq
    %v466 = vshrl.u32 %v465, 7
    %v467 = vsub.s32 4, %v466
    %v468 = vrot.slane %v45, %v467
    %v469 = vlaneseq
    %v470 = vshrl.u32 %v469, 7
    %v471 = vsub.s32 4, %v470
    %v472 = vrot.slane %v46, %v471
    %v473 = vlaneseq
    %v474 = vshrl.u32 %v473, 7
    %v475 = vsub.s32 4, %v474
    %v476 = vrot.slane %v47, %v475
    %v477 = vlaneseq
    %v478 = vshrl.u32 %v477, 7
    %v479 = vsub.s32 4, %v478
    %v480 = vrot.slane %v48, %v479
    %v481 = vlaneseq
    %v482 = vshrl.u32 %v481, 7
    %v483 = vsub.s32 4, %v482
    %v484 = vrot.slane %v49, %v483
    %v485 = vlaneseq
    %v486 = vshrl.u32 %v485, 7
    %v487 = vsub.s32 4, %v486
    %v488 = vrot.slane %v50, %v487
    %v489 = vlaneseq
    %v490 = vshrl.u32 %v489, 7
    %v491 = vsub.s32 4, %v490
    %v492 = vrot.slane %v51, %v491
    %v493 = vlaneseq
    %v494 = vshrl.u32 %v493, 7
    %v495 = vsub.s32 4, %v494
    %v496 = vrot.slane %v52, %v495
    %v497 = vmul.f32 %v436, %v37
    %v498 = vmul.f32 %v440, %v38
    %v499 = vmul.f32 %v444, %v39
    %v500 = vmul.f32 %v448, %v40
    %v501 = vmul.f32 %v452, %v41
    %v502 = vmul.f32 %v456, %v42
    %v503 = vmul.f32 %v460, %v43
    %v504 = vmul.f32 %v464, %v44
    %v505 = vmul.f32 %v468, %v45
    %v506 = vmul.f32 %v472, %v46
    %v507 = vmul.f32 %v476, %v47
    %v508 = vmul.f32 %v480, %v48
    %v509 = vmul.f32 %v484, %v49
    %v510 = vmul.f32 %v488, %v50
    %v511 = vmul.f32 %v492, %v51
    %v512 = vmul.f32 %v496, %v52
    %v513 = vadd.f32 %v497, %v498
    %v514 = vadd.f32 %v513, %v499
    %v515 = vadd.f32 %v514, %v500
    %v516 = vadd.f32 %v515, %v501
    %v517 = vadd.f32 %v516, %v502
    %v518 = vadd.f32 %v517, %v503
    %v519 = vadd.f32 %v518, %v504
    %v520 = vadd.f32 %v519, %v505
    %v521 = vadd.f32 %v520, %v506
    %v522 = vadd.f32 %v521, %v507
    %v523 = vadd.f32 %v522, %v508
    %v524 = vadd.f32 %v523, %v509
    %v525 = vadd.f32 %v524, %v510
    %v526 = vadd.f32 %v525, %v511
    %v527 = vadd.f32 %v526, %v512
    %v528 = vlaneseq
    %v529 = vshrl.u32 %v528, 7
    %v530 = vsub.s32 5, %v529
    %v531 = vrot.slane %v37, %v530
    %v532 = vlaneseq
    %v533 = vshrl.u32 %v532, 7
    %v534 = vsub.s32 5, %v533
    %v535 = vrot.slane %v38, %v534
    %v536 = vlaneseq
    %v537 = vshrl.u32 %v536, 7
    %v538 = vsub.s32 5, %v537
    %v539 = vrot.slane %v39, %v538
    %v540 = vlaneseq
    %v541 = vshrl.u32 %v540, 7
    %v542 = vsub.s32 5, %v541
    %v543 = vrot.slane %v40, %v542
    %v544 = vlaneseq
    %v545 = vshrl.u32 %v544, 7
    %v546 = vsub.s32 5, %v545
    %v547 = vrot.slane %v41, %v546
    %v548 = vlaneseq
    %v549 = vshrl.u32 %v548, 7
    %v550 = vsub.s32 5, %v549
    %v551 = vrot.slane %v42, %v550
    %v552 = vlaneseq
    %v553 = vshrl.u32 %v552, 7
    %v554 = vsub.s32 5, %v553
    %v555 = vrot.slane %v43, %v554
    %v556 = vlaneseq
    %v557 = vshrl.u32 %v556, 7
    %v558 = vsub.s32 5, %v557
    %v559 = vrot.slane %v44, %v558
    %v560 = vlaneseq
    %v561 = vshrl.u32 %v560, 7
    %v562 = vsub.s32 5, %v561
    %v563 = vrot.slane %v45, %v562
    %v564 = vlaneseq
    %v565 = vshrl.u32 %v564, 7
    %v566 = vsub.s32 5, %v565
    %v567 = vrot.slane %v46, %v566
    %v568 = vlaneseq
    %v569 = vshrl.u32 %v568, 7
    %v570 = vsub.s32 5, %v569
    %v571 = vrot.slane %v47, %v570
    %v572 = vlaneseq
    %v573 = vshrl.u32 %v572, 7
    %v574 = vsub.s32 5, %v573
    %v575 = vrot.slane %v48, %v574
    %v576 = vlaneseq
    %v577 = vshrl.u32 %v576, 7
    %v578 = vsub.s32 5, %v577
    %v579 = vrot.slane %v49, %v578
    %v580 = vlaneseq
    %v581 = vshrl.u32 %v580, 7
    %v582 = vsub.s32 5, %v581
    %v583 = vrot.slane %v50, %v582
    %v584 = vlaneseq
    %v585 = vshrl.u32 %v584, 7
    %v586 = vsub.s32 5, %v585
    %v587 = vrot.slane %v51, %v586
    %v588 = vlaneseq
    %v589 = vshrl.u32 %v588, 7
    %v590 = vsub.s32 5, %v589
    %v591 = vrot.slane %v52, %v590
    %v592 = vmul.f32 %v531, %v37
    %v593 = vmul.f32 %v535, %v38
    %v594 = vmul.f32 %v539, %v39
    %v595 = vmul.f32 %v543, %v40
    %v596 = vmul.f32 %v547, %v41
    %v597 = vmul.f32 %v551, %v42
    %v598 = vmul.f32 %v555, %v43
    %v599 = vmul.f32 %v559, %v44
    %v600 = vmul.f32 %v563, %v45
    %v601 = vmul.f32 %v567, %v46
    %v602 = vmul.f32 %v571, %v47
    %v603 = vmul.f32 %v575, %v48
    %v604 = vmul.f32 %v579, %v49
    %v605 = vmul.f32 %v583, %v50
    %v606 = vmul.f32 %v587, %v51
    %v607 = vmul.f32 %v591, %v52
    %v608 = vadd.f32 %v592, %v593
    %v609 = vadd.f32 %v608, %v594
    %v610 = vadd.f32 %v609, %v595
    %v611 = vadd.f32 %v610, %v596
    %v612 = vadd.f32 %v611, %v597
    %v613 = vadd.f32 %v612, %v598
    %v614 = vadd.f32 %v613, %v599
    %v615 = vadd.f32 %v614, %v600
    %v616 = vadd.f32 %v615, %v601
    %v617 = vadd.f32 %v616, %v602
    %v618 = vadd.f32 %v617, %v603
    %v619 = vadd.f32 %v618, %v604
    %v620 = vadd.f32 %v619, %v605
    %v621 = vadd.f32 %v620, %v606
    %v622 = vadd.f32 %v621, %v607
    %v623 = vlaneseq
    %v624 = vshrl.u32 %v623, 7
    %v625 = vsub.s32 6, %v624
    %v626 = vrot.slane %v37, %v625
    %v627 = vlaneseq
    %v628 = vshrl.u32 %v627, 7
    %v629 = vsub.s32 6, %v628
    %v630 = vrot.slane %v38, %v629
    %v631 = vlaneseq
    %v632 = vshrl.u32 %v631, 7
    %v633 = vsub.s32 6, %v632
    %v634 = vrot.slane %v39, %v633
    %v635 = vlaneseq
    %v636 = vshrl.u32 %v635, 7
    %v637 = vsub.s32 6, %v636
    %v638 = vrot.slane %v40, %v637
    %v639 = vlaneseq
    %v640 = vshrl.u32 %v639, 7
    %v641 = vsub.s32 6, %v640
    %v642 = vrot.slane %v41, %v641
    %v643 = vlaneseq
    %v644 = vshrl.u32 %v643, 7
    %v645 = vsub.s32 6, %v644
    %v646 = vrot.slane %v42, %v645
    %v647 = vlaneseq
    %v648 = vshrl.u32 %v647, 7
    %v649 = vsub.s32 6, %v648
    %v650 = vrot.slane %v43, %v649
    %v651 = vlaneseq
    %v652 = vshrl.u32 %v651, 7
    %v653 = vsub.s32 6, %v652
    %v654 = vrot.slane %v44, %v653
    %v655 = vlaneseq
    %v656 = vshrl.u32 %v655, 7
    %v657 = vsub.s32 6, %v656
    %v658 = vrot.slane %v45, %v657
    %v659 = vlaneseq
    %v660 = vshrl.u32 %v659, 7
    %v661 = vsub.s32 6, %v660
    %v662 = vrot.slane %v46, %v661
    %v663 = vlaneseq
    %v664 = vshrl.u32 %v663, 7
    %v665 = vsub.s32 6, %v664
    %v666 = vrot.slane %v47, %v665
    %v667 = vlaneseq
    %v668 = vshrl.u32 %v667, 7
    %v669 = vsub.s32 6, %v668
    %v670 = vrot.slane %v48, %v669
    %v671 = vlaneseq
    %v672 = vshrl.u32 %v671, 7
    %v673 = vsub.s32 6, %v672
    %v674 = vrot.slane %v49, %v673
    %v675 = vlaneseq
    %v676 = vshrl.u32 %v675, 7
    %v677 = vsub.s32 6, %v676
    %v678 = vrot.slane %v50, %v677
    %v679 = vlaneseq
    %v680 = vshrl.u32 %v679, 7
    %v681 = vsub.s32 6, %v680
    %v682 = vrot.slane %v51, %v681
    %v683 = vlaneseq
    %v684 = vshrl.u32 %v683, 7
    %v685 = vsub.s32 6, %v684
    %v686 = vrot.slane %v52, %v685
    %v687 = vmul.f32 %v626, %v37
    %v688 = vmul.f32 %v630, %v38
    %v689 = vmul.f32 %v634, %v39
    %v690 = vmul.f32 %v638, %v40
    %v691 = vmul.f32 %v642, %v41
    %v692 = vmul.f32 %v646, %v42
    %v693 = vmul.f32 %v650, %v43
    %v694 = vmul.f32 %v654, %v44
    %v695 = vmul.f32 %v658, %v45
    %v696 = vmul.f32 %v662, %v46
    %v697 = vmul.f32 %v666, %v47
    %v698 = vmul.f32 %v670, %v48
    %v699 = vmul.f32 %v674, %v49
    %v700 = vmul.f32 %v678, %v50
    %v701 = vmul.f32 %v682, %v51
    %v702 = vmul.f32 %v686, %v52
    %v703 = vadd.f32 %v687, %v688
    %v704 = vadd.f32 %v703, %v689
    %v705 = vadd.f32 %v704, %v690
    %v706 = vadd.f32 %v705, %v691
    %v707 = vadd.f32 %v706, %v692
    %v708 = vadd.f32 %v707, %v693
    %v709 = vadd.f32 %v708, %v694
    %v710 = vadd.f32 %v709, %v695
    %v711 = vadd.f32 %v710, %v696
    %v712 = vadd.f32 %v711, %v697
    %v713 = vadd.f32 %v712, %v698
    %v714 = vadd.f32 %v713, %v699
    %v715 = vadd.f32 %v714, %v700
    %v716 = vadd.f32 %v715, %v701
    %v717 = vadd.f32 %v716, %v702
    %v718 = vlaneseq
    %v719 = vshrl.u32 %v718, 7
    %v720 = vsub.s32 7, %v719
    %v721 = vrot.slane %v37, %v720
    %v722 = vlaneseq
    %v723 = vshrl.u32 %v722, 7
    %v724 = vsub.s32 7, %v723
    %v725 = vrot.slane %v38, %v724
    %v726 = vlaneseq
    %v727 = vshrl.u32 %v726, 7
    %v728 = vsub.s32 7, %v727
    %v729 = vrot.slane %v39, %v728
    %v730 = vlaneseq
    %v731 = vshrl.u32 %v730, 7
    %v732 = vsub.s32 7, %v731
    %v733 = vrot.slane %v40, %v732
    %v734 = vlaneseq
    %v735 = vshrl.u32 %v734, 7
    %v736 = vsub.s32 7, %v735
    %v737 = vrot.slane %v41, %v736
    %v738 = vlaneseq
    %v739 = vshrl.u32 %v738, 7
    %v740 = vsub.s32 7, %v739
    %v741 = vrot.slane %v42, %v740
    %v742 = vlaneseq
    %v743 = vshrl.u32 %v742, 7
    %v744 = vsub.s32 7, %v743
    %v745 = vrot.slane %v43, %v744
    %v746 = vlaneseq
    %v747 = vshrl.u32 %v746, 7
    %v748 = vsub.s32 7, %v747
    %v749 = vrot.slane %v44, %v748
    %v750 = vlaneseq
    %v751 = vshrl.u32 %v750, 7
    %v752 = vsub.s32 7, %v751
    %v753 = vrot.slane %v45, %v752
    %v754 = vlaneseq
    %v755 = vshrl.u32 %v754, 7
    %v756 = vsub.s32 7, %v755
    %v757 = vrot.slane %v46, %v756
    %v758 = vlaneseq
    %v759 = vshrl.u32 %v758, 7
    %v760 = vsub.s32 7, %v759
    %v761 = vrot.slane %v47, %v760
    %v762 = vlaneseq
    %v763 = vshrl.u32 %v762, 7
    %v764 = vsub.s32 7, %v763
    %v765 = vrot.slane %v48, %v764
    %v766 = vlaneseq
    %v767 = vshrl.u32 %v766, 7
    %v768 = vsub.s32 7, %v767
    %v769 = vrot.slane %v49, %v768
    %v770 = vlaneseq
    %v771 = vshrl.u32 %v770, 7
    %v772 = vsub.s32 7, %v771
    %v773 = vrot.slane %v50, %v772
    %v774 = vlaneseq
    %v775 = vshrl.u32 %v774, 7
    %v776 = vsub.s32 7, %v775
    %v777 = vrot.slane %v51, %v776
    %v778 = vlaneseq
    %v779 = vshrl.u32 %v778, 7
    %v780 = vsub.s32 7, %v779
    %v781 = vrot.slane %v52, %v780
    %v782 = vmul.f32 %v721, %v37
    %v783 = vmul.f32 %v725, %v38
    %v784 = vmul.f32 %v729, %v39
    %v785 = vmul.f32 %v733, %v40
    %v786 = vmul.f32 %v737, %v41
    %v787 = vmul.f32 %v741, %v42
    %v788 = vmul.f32 %v745, %v43
    %v789 = vmul.f32 %v749, %v44
    %v790 = vmul.f32 %v753, %v45
    %v791 = vmul.f32 %v757, %v46
    %v792 = vmul.f32 %v761, %v47
    %v793 = vmul.f32 %v765, %v48
    %v794 = vmul.f32 %v769, %v49
    %v795 = vmul.f32 %v773, %v50
    %v796 = vmul.f32 %v777, %v51
    %v797 = vmul.f32 %v781, %v52
    %v798 = vadd.f32 %v782, %v783
    %v799 = vadd.f32 %v798, %v784
    %v800 = vadd.f32 %v799, %v785
    %v801 = vadd.f32 %v800, %v786
    %v802 = vadd.f32 %v801, %v787
    %v803 = vadd.f32 %v802, %v788
    %v804 = vadd.f32 %v803, %v789
    %v805 = vadd.f32 %v804, %v790
    %v806 = vadd.f32 %v805, %v791
    %v807 = vadd.f32 %v806, %v792
    %v808 = vadd.f32 %v807, %v793
    %v809 = vadd.f32 %v808, %v794
    %v810 = vadd.f32 %v809, %v795
    %v811 = vadd.f32 %v810, %v796
    %v812 = vadd.f32 %v811, %v797
    %v813 = vld [vmem:[%s1] sm:$0xff]
    %v814 = vld [vmem:[%s1 + $0x8] sm:$0xff]
    %v815 = vld [vmem:[%s1 + $0x10] sm:$0xff]
    %v816 = vld [vmem:[%s1 + $0x18] sm:$0xff]
    %v817 = vld [vmem:[%s2] sm:$0xff]
    %v818 = vld [vmem:[%s2 + $0x8] sm:$0xff]
    %v819 = vld [vmem:[%s2 + $0x10] sm:$0xff]
    %v820 = vld [vmem:[%s2 + $0x18] sm:$0xff]
    %822 = vset.pattern.permute.xlu0 0
    %823 = vperm.xlu0 %822, %v817
    %v824 = vpop.permute.xlu0 %823
    %827 = vset.pattern.permute.xlu0 0
    %828 = vperm.xlu0 %827, %v818
    %v829 = vpop.permute.xlu0 %828
    %832 = vset.pattern.permute.xlu0 0
    %833 = vperm.xlu0 %832, %v819
    %v834 = vpop.permute.xlu0 %833
    %837 = vset.pattern.permute.xlu0 0
    %838 = vperm.xlu0 %837, %v820
    %v839 = vpop.permute.xlu0 %838
    %vm841 = vcmask 523264
    %v843 = vsel %vm841, %v813, 0
    %v846 = vsel %vm841, %v814, 0
    %v849 = vsel %vm841, %v815, 0
    %v852 = vsel %vm841, %v816, 0
    %854 = vmatprep.subr.mxu0 0.0
    %855 = vmatpush1.msra.mxu0 0.0
    %856 = vmatprep.subr.mxu0 0.0
    %857 = vmatpush1.msra.mxu0 0.0
    %858 = vmatprep.subr.mxu0 0.0
    %859 = vmatpush1.msra.mxu0 0.0
    %860 = vmatprep.subr.mxu0 0.0
    %861 = vmatpush1.msra.mxu0 0.0
    %862 = vmatprep.subr.mxu0 0.0
    %863 = vmatpush1.msra.mxu0 0.0
    %864 = vmatprep.subr.mxu0 0.0
    %865 = vmatpush1.msra.mxu0 0.0
    %866 = vmatprep.subr.mxu0 0.0
    %867 = vmatpush1.msra.mxu0 0.0
    %868 = vmatprep.subr.mxu0 0.0
    %869 = vmatpush1.msra.mxu0 0.0
    %870 = vmatprep.subr.mxu0 0.0
    %871 = vmatpush1.msra.mxu0 %v812
    %872 = vmatprep.subr.mxu0 0.0
    %873 = vmatpush1.msra.mxu0 %v717
    %874 = vmatprep.subr.mxu0 0.0
    %875 = vmatpush1.msra.mxu0 %v622
    %876 = vmatprep.subr.mxu0 0.0
    %877 = vmatpush1.msra.mxu0 %v527
    %878 = vmatprep.subr.mxu0 0.0
    %879 = vmatpush1.msra.mxu0 %v432
    %880 = vmatprep.subr.mxu0 0.0
    %881 = vmatpush1.msra.mxu0 %v337
    %882 = vmatprep.subr.mxu0 0.0
    %883 = vmatpush1.msra.mxu0 %v242
    %884 = vmatprep.subr.mxu0 0.0
    %885 = vmatpush1.msra.mxu0 %v147
    %886 = vmatprep.subr.mxu0 0.0
    %887 = vmatpush2.msra.mxu0 0.0
    %888 = vmatprep.subr.mxu0 0.0
    %889 = vmatpush2.msra.mxu0 0.0
    %890 = vmatprep.subr.mxu0 0.0
    %891 = vmatpush2.msra.mxu0 0.0
    %892 = vmatprep.subr.mxu0 0.0
    %893 = vmatpush2.msra.mxu0 0.0
    %894 = vmatprep.subr.mxu0 0.0
    %895 = vmatpush2.msra.mxu0 0.0
    %896 = vmatprep.subr.mxu0 0.0
    %897 = vmatpush2.msra.mxu0 0.0
    %898 = vmatprep.subr.mxu0 0.0
    %899 = vmatpush2.msra.mxu0 0.0
    %900 = vmatprep.subr.mxu0 0.0
    %901 = vmatpush2.msra.mxu0 0.0
    %902 = vmatprep.subr.mxu0 0.0
    %903 = vmatpush2.msra.mxu0 0.0
    %904 = vmatprep.subr.mxu0 0.0
    %905 = vmatpush2.msra.mxu0 0.0
    %906 = vmatprep.subr.mxu0 0.0
    %907 = vmatpush2.msra.mxu0 0.0
    %908 = vmatprep.subr.mxu0 0.0
    %909 = vmatpush2.msra.mxu0 0.0
    %910 = vmatprep.subr.mxu0 0.0
    %911 = vmatpush2.msra.mxu0 0.0
    %912 = vmatprep.subr.mxu0 0.0
    %913 = vmatpush2.msra.mxu0 0.0
    %914 = vmatprep.subr.mxu0 0.0
    %915 = vmatpush2.msra.mxu0 0.0
    %916 = vmatprep.subr.mxu0 0.0
    %917 = vmatpush2.msra.mxu0 0.0
    %918 = vmatprep.mubr.f32.mxu0 0.0
    %919 = vmatmul.mubr.f32.gmra.mxu0 %v843
    %v920 = vpop.f32.mrf.mxu0
    %v921 = vadd.f32 %v824, %v920
    %v922 = vpop.f32.mrf.mxu0
    %923 = vmatprep.mubr.f32.mxu0 0.0
    %924 = vmatmul.mubr.f32.gmra.mxu0 %v846
    %v925 = vpop.f32.mrf.mxu0
    %v926 = vadd.f32 %v829, %v925
    %v927 = vpop.f32.mrf.mxu0
    %928 = vmatprep.mubr.f32.mxu0 0.0
    %929 = vmatmul.mubr.f32.gmra.mxu0 %v849
    %v930 = vpop.f32.mrf.mxu0
    %v931 = vadd.f32 %v834, %v930
    %v932 = vpop.f32.mrf.mxu0
    %933 = vmatprep.mubr.f32.mxu0 0.0
    %934 = vmatmul.mubr.f32.gmra.mxu0 %v852
    %v935 = vpop.f32.mrf.mxu0
    %v936 = vadd.f32 %v839, %v935
    %v937 = vpop.f32.mrf.mxu0
    %938 = vdwg.mxu0
    %v939 = vxor.u32 %v921, 2147483648
    %v940 = vxor.u32 %v926, 2147483648
    %v941 = vxor.u32 %v931, 2147483648
    %v942 = vxor.u32 %v936, 2147483648
    %v943 = vmul.f32 %v939, 1.442695
    %v944 = vpow.pop %v943
    %v945 = vmul.f32 %v940, 1.442695
    %v946 = vpow.pop %v945
    %v947 = vmul.f32 %v941, 1.442695
    %v948 = vpow.pop %v947
    %v949 = vmul.f32 %v942, 1.442695
    %v950 = vpow.pop %v949
    %v951 = vadd.f32 %v944, 1.0
    %v952 = vadd.f32 %v946, 1.0
    %v953 = vadd.f32 %v948, 1.0
    %v954 = vadd.f32 %v950, 1.0
    %v955 = vrcp.pop %v951
    %v956 = vmul.f32 1.0, %v955
    %v957 = vrcp.pop %v952
    %v958 = vmul.f32 1.0, %v957
    %v959 = vrcp.pop %v953
    %v960 = vmul.f32 1.0, %v959
    %v961 = vrcp.pop %v954
    %v962 = vmul.f32 1.0, %v961
    %v963 = vld [vmem:[%s3] sm:$0xff]
    %v964 = vld [vmem:[%s3 + $0x8] sm:$0xff]
    %v965 = vld [vmem:[%s3 + $0x10] sm:$0xff]
    %v966 = vld [vmem:[%s3 + $0x18] sm:$0xff]
    %968 = vset.pattern.permute.xlu0 0
    %969 = vperm.xlu0 %968, %v963
    %v970 = vpop.permute.xlu0 %969
    %973 = vset.pattern.permute.xlu0 0
    %974 = vperm.xlu0 %973, %v964
    %v975 = vpop.permute.xlu0 %974
    %978 = vset.pattern.permute.xlu0 0
    %979 = vperm.xlu0 %978, %v965
    %v980 = vpop.permute.xlu0 %979
    %983 = vset.pattern.permute.xlu0 0
    %984 = vperm.xlu0 %983, %v966
    %v985 = vpop.permute.xlu0 %984
    %v987 = vmul.f32 %v956, %v970
    %v988 = vmul.f32 %v958, %v975
    %v989 = vmul.f32 %v960, %v980
    %v990 = vmul.f32 %v962, %v985
    %v991 = vadd.f32 %v987, %v988
    %v992 = vadd.f32 %v991, %v989
    %v993 = vadd.f32 %v992, %v990
    %v994 = vrot.slane %v993, 4
    %v995 = vadd.f32 %v993, %v994
    %v996 = vrot.slane %v995, 2
    %v997 = vadd.f32 %v995, %v996
    %v998 = vrot.slane %v997, 1
    %v999 = vadd.f32 %v997, %v998
    %v1000 = vld [vmem:[#allocation2] sm:$0x1]
    %1002 = vset.pattern.permute.xlu0 0
    %1003 = vperm.xlu0 %1002, %v1000
    %v1004 = vpop.permute.xlu0 %1003
    %v1006 = vlaneseq
    %v1007 = vshrl.u32 %v1006, 7
    %v1008 = vsub.s32 0, %v1007
    %v1009 = vrot.slane %v1004, %v1008
    %v1010 = vadd.f32 %v999, %v1009
    %1011 = vst [vmem:[#allocation6] sm:$0x1] %v1010
    // Predicated region
    $region26: #{tpu_custom_call.1} parent=1 // pred_check
      _
    $region27: #{tpu_custom_call.1} parent=1 // pred_check_branch
      %1013 = sbr.rel (0) target = $region29
    $region28: #{tpu_custom_call.1} parent=1 // pred_region
      %s1015 = ssub.s32 16, 16
      %1016 = vsyncadd [#allocation5], %s1015
      %s1018 = sshll.u32 [#allocation6], 4
      %s1019 = int_to_ptr.vmem [resolvable:$true] %s1018
      %1021 = dma.vmem_to_hbm [thread:$0]  %s1019, 16, %s5, [#allocation5]
    $region29: #{tpu_custom_call.1} parent=1 // pred_fallthru
      _
    // Predicated region
    $region30: #{tpu_custom_call.1} parent=1 // pred_check
      _
    $region31: #{tpu_custom_call.1} parent=1 // pred_check_branch
      %1023 = sbr.rel (0) target = $region33
    $region32: #{tpu_custom_call.1} parent=1 // pred_region
      %1024 = dma.done [#allocation5], 16
    $region33: #{tpu_custom_call.1} parent=1 // pred_fallthru
      _
    %1025 = vsyncpa [#allocation4], 1
    %1026 = vsyncpa [#allocation5], 1

</llo_original>
